<compile_context>
chip_gen: v6e
topology: v6e:2x2x1
jax: 0.10.0
libtpu: 0.0.40
codegen_flags: <defaults>
</compile_context>

<pallas_src>
import functools

import jax
import jax.numpy as jnp
from jax.experimental import pallas as pl
from jax.experimental.pallas import tpu as pltpu

EPS = 1e-6


def _dice_partial_kernel(x_ref, t_ref, int_ref, den_ref, inter_acc, denom_acc, *,
                         normalization, total, tile, need_mask):
    """Accumulate per-channel sum(p*t) and sum(p*p + t*t) for one batch item.

    Tile shape is (C, tile_rows, 128) [packed path] or (C, tile_hw) [fallback path].
    Grid is (B, num_tiles); outputs are per-(b, c) partials of shape (C, 1).
    """
    j = pl.program_id(1)

    @pl.when(j == 0)
    def _():
        inter_acc[...] = jnp.zeros_like(inter_acc)
        denom_acc[...] = jnp.zeros_like(denom_acc)

    x = x_ref[...].astype(jnp.float32)
    t = t_ref[...].astype(jnp.float32)

    # Channel axis is axis 0 of the tile and is always fully resident, so softmax over
    # channels (PyTorch dim=1) is exact.
    if normalization == "sigmoid":
        p = jax.nn.sigmoid(x)
    elif normalization == "softmax":
        p = jax.nn.softmax(x, axis=0)
    else:  # 'none'
        p = x

    if need_mask:
        # Tail block: zero the out-of-bounds slice (axis 1 of the tile is the tiled axis).
        valid = total - j * tile
        idx = jax.lax.broadcasted_iota(jnp.int32, x.shape, dimension=1)
        keep = idx < valid
        p = jnp.where(keep, p, 0.0)
        t = jnp.where(keep, t, 0.0)

    # Element-wise accumulation only (no per-tile cross-lane reduce): pure VPU adds.
    inter_acc[...] += p * t
    denom_acc[...] += p * p + t * t

    @pl.when(j == pl.num_programs(1) - 1)
    def _():
        s_i = inter_acc[...]
        s_d = denom_acc[...]
        while s_i.ndim > 2:                       # (C, rows, 128) -> (C, rows)
            s_i = jnp.sum(s_i, axis=-1)
            s_d = jnp.sum(s_d, axis=-1)
        int_ref[...] = jnp.sum(s_i, axis=-1, keepdims=True)   # (C, 1)
        den_ref[...] = jnp.sum(s_d, axis=-1, keepdims=True)   # (C, 1)


def dice_loss(x, target, weight=None, *, normalization="sigmoid",
              target_block_bytes=2 * 1024 * 1024):
    """1 - mean(per_channel_dice(normalization(x), target)).  x/target: NCHW."""
    # TODO(synk): the base class's `dice` is abstract; this implements the canonical
    # compute_per_channel_dice used by the concrete DiceLoss (incl. the `weight` buffer).
    assert normalization in ("sigmoid", "softmax", "none")
    B, C, H, W = x.shape
    assert target.shape == x.shape
    HW = H * W

    # ~target_block_bytes of f32 per input block per grid step (amortises the ~0.35 us
    # per-step pipeline overhead).  Rounded so block dims stay (8,128)-legal.
    per_chan = target_block_bytes // (4 * C)
    per_chan = min(per_chan, 128 * 1024)
    per_chan = max(1024, (per_chan // 1024) * 1024)      # multiple of 1024

    if HW % 128 == 0:
        # Packed path: view the spatial axis as (rows, 128) lanes so the (sublane, lane)
        # tile is dense even for C < 8.  Zero-copy reshape, no HBM transpose.
        rows = HW // 128
        xv = x.reshape(B, C, rows, 128)
        tv = target.reshape(B, C, rows, 128)
        tile = min(per_chan // 128, rows)                # multiple of 8, or == rows
        total = rows
        block = (pl.Squeezed(), C, tile, 128)
        index_map = lambda b, j: (b, 0, j, 0)
        acc_shape = (C, tile, 128)
    else:
        # Fallback: flat (B, C, HW) view (still zero-copy, just lane-tiled).
        xv = x.reshape(B, C, HW)
        tv = target.reshape(B, C, HW)
        tile = min(per_chan, HW)                         # multiple of 128, or == HW
        total = HW
        block = (pl.Squeezed(), C, tile)
        index_map = lambda b, j: (b, 0, j)
        acc_shape = (C, tile)

    num_tiles = pl.cdiv(total, tile)
    need_mask = (total % tile) != 0

    kernel = functools.partial(
        _dice_partial_kernel,
        normalization=normalization, total=total, tile=tile, need_mask=need_mask)

    out_spec = pl.BlockSpec((pl.Squeezed(), C, 1), lambda b, j: (b, 0, 0))

    inter_parts, denom_parts = pl.pallas_call(
        kernel,
        out_shape=(jax.ShapeDtypeStruct((B, C, 1), jnp.float32),
                   jax.ShapeDtypeStruct((B, C, 1), jnp.float32)),
        grid_spec=pltpu.PrefetchScalarGridSpec(
            num_scalar_prefetch=0,
            grid=(B, num_tiles),
            in_specs=[pl.BlockSpec(block, index_map),
                      pl.BlockSpec(block, index_map)],
            out_specs=[out_spec, out_spec],
            scratch_shapes=[pltpu.VMEM(acc_shape, jnp.float32),
                            pltpu.VMEM(acc_shape, jnp.float32)],
        ),
        compiler_params=pltpu.CompilerParams(
            # B is independent -> megacore-parallel (v7x 2 TCs); reduction axis last.
            dimension_semantics=("parallel", "arbitrary"),
            # Double-buffered working set stays well under 32 MiB by construction; set
            # the scoped limit explicitly so v5e (16 MiB default) takes the same tiles.
            vmem_limit_bytes=32 * 1024 * 1024,
        ),
    )(xv, tv)

    # Tiny epilogue: combine per-batch partials, optional channel weight, dice, mean.
    intersect = jnp.sum(inter_parts[:, :, 0], axis=0)    # (C,)
    denom = jnp.sum(denom_parts[:, :, 0], axis=0)        # (C,)
    if weight is not None:
        intersect = intersect * weight.astype(jnp.float32)
    dice = 2.0 * intersect / jnp.maximum(denom, EPS)
    return 1.0 - jnp.mean(dice)


def _reference_loss(x, target, weight=None, normalization="sigmoid"):
    """Pure-JAX reference mirroring the PyTorch semantics."""
    if normalization == "sigmoid":
        p = jax.nn.sigmoid(x)
    elif normalization == "softmax":
        p = jax.nn.softmax(x, axis=1)
    else:
        p = x
    C = x.shape[1]
    pf = jnp.transpose(p, (1, 0, 2, 3)).reshape(C, -1).astype(jnp.float32)
    tf = jnp.transpose(target, (1, 0, 2, 3)).reshape(C, -1).astype(jnp.float32)
    intersect = jnp.sum(pf * tf, axis=-1)
    if weight is not None:
        intersect = intersect * weight.astype(jnp.float32)
    denom = jnp.sum(pf * pf, axis=-1) + jnp.sum(tf * tf, axis=-1)
    dice = 2.0 * intersect / jnp.maximum(denom, EPS)
    return 1.0 - jnp.mean(dice)


if __name__ == "__main__":
    key = jax.random.PRNGKey(0)

    def check(shape, normalization, *, weight=None, target_dtype=jnp.float32,
              target_block_bytes=2 * 1024 * 1024):
        k1, k2 = jax.random.split(key)
        x = jax.random.normal(k1, shape, dtype=jnp.float32)       # logits
        t = (jax.random.uniform(k2, shape) > 0.5).astype(target_dtype)
        fn = jax.jit(functools.partial(dice_loss, normalization=normalization,
                                       target_block_bytes=target_block_bytes))
        loss = jax.block_until_ready(fn(x, t, weight))
        ref = _reference_loss(x, t, weight, normalization)
        assert jnp.allclose(loss, ref, atol=1e-5, rtol=1e-5), \
            (shape, normalization, float(loss), float(ref))

    # Primary case (module's typical NCHW input); packed (rows, 128) layout.
    check((2, 4, 16, 16), "sigmoid")
    # softmax(dim=1) and identity normalizations.
    check((2, 4, 16, 16), "softmax")
    check((2, 4, 16, 16), "none")
    # Optional per-channel weight + target in a narrow dtype (no wrapper upcast).
    check((2, 4, 16, 16), "sigmoid",
          weight=jnp.array([0.5, 1.0, 2.0, 1.5], jnp.float32),
          target_dtype=jnp.bfloat16)
    # Packed path with a row-tail block (rows=12, tile=8 -> masked tail, 2 grid steps).
    check((1, 4, 48, 32), "sigmoid", target_block_bytes=16384)
    # HW not a multiple of 128 -> flat fallback path with a masked lane tail.
    check((1, 4, 40, 40), "sigmoid", target_block_bytes=16384)

    print("KERNEL_OK")
</pallas_src>

<mosaic_0001>
module attributes {stable_mosaic.version = 11 : i64} {
  func.func @_dice_partial_kernel(%arg0: i32, %arg1: i32, %arg2: memref<1x4x2x128xf32, #tpu.memory_space<vmem>>, %arg3: memref<1x4x2x128xf32, #tpu.memory_space<vmem>>, %arg4: memref<1x4x1xf32, #tpu.memory_space<vmem>>, %arg5: memref<1x4x1xf32, #tpu.memory_space<vmem>>, %arg6: memref<4x2x128xf32, #tpu.memory_space<vmem>>, %arg7: memref<4x2x128xf32, #tpu.memory_space<vmem>>) attributes {dimension_semantics = [#tpu.dimension_semantics<parallel>, #tpu.dimension_semantics<arbitrary>], iteration_bounds = array<i64: 2, 1>, scalar_prefetch = 0 : i64, scratch_operands = 2 : i64, tpu.core_type = #tpu.core_type<tc>, window_params = [{transform_indices = @transform_0, window_bounds = array<i64: 1, 4, 2, 128>}, {transform_indices = @transform_1, window_bounds = array<i64: 1, 4, 2, 128>}, {transform_indices = @transform_2, window_bounds = array<i64: 1, 4, 1>}, {transform_indices = @transform_3, window_bounds = array<i64: 1, 4, 1>}]} {
    %c0_i32 = arith.constant 0 : i32
    %0 = arith.cmpi eq, %arg1, %c0_i32 : i32
    %1 = arith.extui %0 : i1 to i32
    %c0_i32_0 = arith.constant 0 : i32
    %2 = arith.cmpi ne, %1, %c0_i32_0 : i32
    scf.if %2 {
      %cst_22 = arith.constant 0.000000e+00 : f32
      %25 = vector.broadcast %cst_22 : f32 to vector<4x2x128xf32>
      %c0_23 = arith.constant 0 : index
      %c0_24 = arith.constant 0 : index
      %c0_25 = arith.constant 0 : index
      %26 = vector.load %arg6[%c0_23, %c0_24, %c0_25] : memref<4x2x128xf32, #tpu.memory_space<vmem>>, vector<4x2x128xf32>
      tpu.vector_store %arg6[%c0_23, %c0_24, %c0_25], %25 {strides = array<i32>} : memref<4x2x128xf32, #tpu.memory_space<vmem>>, vector<4x2x128xf32>,
      %cst_26 = arith.constant 0.000000e+00 : f32
      %27 = vector.broadcast %cst_26 : f32 to vector<4x2x128xf32>
      %c0_27 = arith.constant 0 : index
      %c0_28 = arith.constant 0 : index
      %c0_29 = arith.constant 0 : index
      %28 = vector.load %arg7[%c0_27, %c0_28, %c0_29] : memref<4x2x128xf32, #tpu.memory_space<vmem>>, vector<4x2x128xf32>
      tpu.vector_store %arg7[%c0_27, %c0_28, %c0_29], %27 {strides = array<i32>} : memref<4x2x128xf32, #tpu.memory_space<vmem>>, vector<4x2x128xf32>,
    } else {
    }
    %c0 = arith.constant 0 : index
    %c0_1 = arith.constant 0 : index
    %c0_2 = arith.constant 0 : index
    %c0_3 = arith.constant 0 : index
    %3 = vector.load %arg2[%c0, %c0_1, %c0_2, %c0_3] : memref<1x4x2x128xf32, #tpu.memory_space<vmem>>, vector<1x4x2x128xf32>
    %4 = vector.shape_cast %3 : vector<1x4x2x128xf32> to vector<4x2x128xf32>
    %c0_4 = arith.constant 0 : index
    %c0_5 = arith.constant 0 : index
    %c0_6 = arith.constant 0 : index
    %c0_7 = arith.constant 0 : index
    %5 = vector.load %arg3[%c0_4, %c0_5, %c0_6, %c0_7] : memref<1x4x2x128xf32, #tpu.memory_space<vmem>>, vector<1x4x2x128xf32>
    %6 = vector.shape_cast %5 : vector<1x4x2x128xf32> to vector<4x2x128xf32>
    %7 = arith.negf %4 : vector<4x2x128xf32>
    %8 = math.exp %7 : vector<4x2x128xf32>
    %cst = arith.constant 1.000000e+00 : f32
    %9 = vector.broadcast %cst : f32 to vector<4x2x128xf32>
    %10 = arith.addf %9, %8 : vector<4x2x128xf32>
    %11 = arith.divf %9, %10 : vector<4x2x128xf32>
    %c0_8 = arith.constant 0 : index
    %c0_9 = arith.constant 0 : index
    %c0_10 = arith.constant 0 : index
    %12 = vector.load %arg6[%c0_8, %c0_9, %c0_10] : memref<4x2x128xf32, #tpu.memory_space<vmem>>, vector<4x2x128xf32>
    %13 = arith.mulf %11, %6 : vector<4x2x128xf32>
    %14 = arith.addf %12, %13 : vector<4x2x128xf32>
    %c0_11 = arith.constant 0 : index
    %c0_12 = arith.constant 0 : index
    %c0_13 = arith.constant 0 : index
    %15 = vector.load %arg6[%c0_11, %c0_12, %c0_13] : memref<4x2x128xf32, #tpu.memory_space<vmem>>, vector<4x2x128xf32>
    tpu.vector_store %arg6[%c0_11, %c0_12, %c0_13], %14 {strides = array<i32>} : memref<4x2x128xf32, #tpu.memory_space<vmem>>, vector<4x2x128xf32>,
    %c0_14 = arith.constant 0 : index
    %c0_15 = arith.constant 0 : index
    %c0_16 = arith.constant 0 : index
    %16 = vector.load %arg7[%c0_14, %c0_15, %c0_16] : memref<4x2x128xf32, #tpu.memory_space<vmem>>, vector<4x2x128xf32>
    %17 = arith.mulf %11, %11 : vector<4x2x128xf32>
    %18 = arith.mulf %6, %6 : vector<4x2x128xf32>
    %19 = arith.addf %17, %18 : vector<4x2x128xf32>
    %20 = arith.addf %16, %19 : vector<4x2x128xf32>
    %c0_17 = arith.constant 0 : index
    %c0_18 = arith.constant 0 : index
    %c0_19 = arith.constant 0 : index
    %21 = vector.load %arg7[%c0_17, %c0_18, %c0_19] : memref<4x2x128xf32, #tpu.memory_space<vmem>>, vector<4x2x128xf32>
    tpu.vector_store %arg7[%c0_17, %c0_18, %c0_19], %20 {strides = array<i32>} : memref<4x2x128xf32, #tpu.memory_space<vmem>>, vector<4x2x128xf32>,
    %c0_i32_20 = arith.constant 0 : i32
    %22 = arith.cmpi eq, %arg1, %c0_i32_20 : i32
    %23 = arith.extui %22 : i1 to i32
    %c0_i32_21 = arith.constant 0 : i32
    %24 = arith.cmpi ne, %23, %c0_i32_21 : i32
    scf.if %24 {
      %c0_22 = arith.constant 0 : index
      %c0_23 = arith.constant 0 : index
      %c0_24 = arith.constant 0 : index
      %25 = vector.load %arg6[%c0_22, %c0_23, %c0_24] : memref<4x2x128xf32, #tpu.memory_space<vmem>>, vector<4x2x128xf32>
      %c0_25 = arith.constant 0 : index
      %c0_26 = arith.constant 0 : index
      %c0_27 = arith.constant 0 : index
      %26 = vector.load %arg7[%c0_25, %c0_26, %c0_27] : memref<4x2x128xf32, #tpu.memory_space<vmem>>, vector<4x2x128xf32>
      %cst_28 = arith.constant dense<0.000000e+00> : vector<4x2xf32>
      %27 = vector.multi_reduction <add>, %25, %cst_28 [2] : vector<4x2x128xf32> to vector<4x2xf32>
      %cst_29 = arith.constant dense<0.000000e+00> : vector<4x2xf32>
      %28 = vector.multi_reduction <add>, %26, %cst_29 [2] : vector<4x2x128xf32> to vector<4x2xf32>
      %cst_30 = arith.constant dense<0.000000e+00> : vector<4xf32>
      %29 = vector.multi_reduction <add>, %27, %cst_30 [1] : vector<4x2xf32> to vector<4xf32>
      %30 = vector.shape_cast %29 : vector<4xf32> to vector<4x1xf32>
      %c0_31 = arith.constant 0 : index
      %c0_32 = arith.constant 0 : index
      %c0_33 = arith.constant 0 : index
      %31 = vector.load %arg4[%c0_31, %c0_32, %c0_33] : memref<1x4x1xf32, #tpu.memory_space<vmem>>, vector<1x4x1xf32>
      %32 = vector.shape_cast %31 : vector<1x4x1xf32> to vector<4x1xf32>
      %33 = vector.shape_cast %30 : vector<4x1xf32> to vector<1x4x1xf32>
      tpu.vector_store %arg4[%c0_31, %c0_32, %c0_33], %33 {strides = array<i32>} : memref<1x4x1xf32, #tpu.memory_space<vmem>>, vector<1x4x1xf32>,
      %cst_34 = arith.constant dense<0.000000e+00> : vector<4xf32>
      %34 = vector.multi_reduction <add>, %28, %cst_34 [1] : vector<4x2xf32> to vector<4xf32>
      %35 = vector.shape_cast %34 : vector<4xf32> to vector<4x1xf32>
      %c0_35 = arith.constant 0 : index
      %c0_36 = arith.constant 0 : index
      %c0_37 = arith.constant 0 : index
      %36 = vector.load %arg5[%c0_35, %c0_36, %c0_37] : memref<1x4x1xf32, #tpu.memory_space<vmem>>, vector<1x4x1xf32>
      %37 = vector.shape_cast %36 : vector<1x4x1xf32> to vector<4x1xf32>
      %38 = vector.shape_cast %35 : vector<4x1xf32> to vector<1x4x1xf32>
      tpu.vector_store %arg5[%c0_35, %c0_36, %c0_37], %38 {strides = array<i32>} : memref<1x4x1xf32, #tpu.memory_space<vmem>>, vector<1x4x1xf32>,
    } else {
    }
    return
  }
  func.func @transform_0(%arg0: i32, %arg1: i32) -> (i32, i32, i32, i32) {
    %c0_i32 = arith.constant 0 : i32
    %c0_i32_0 = arith.constant 0 : i32
    %c0_i32_1 = arith.constant 0 : i32
    return %arg0, %c0_i32, %arg1, %c0_i32_0 : i32, i32, i32, i32
  }
  func.func @transform_1(%arg0: i32, %arg1: i32) -> (i32, i32, i32, i32) {
    %c0_i32 = arith.constant 0 : i32
    %c0_i32_0 = arith.constant 0 : i32
    %c0_i32_1 = arith.constant 0 : i32
    return %arg0, %c0_i32, %arg1, %c0_i32_0 : i32, i32, i32, i32
  }
  func.func @transform_2(%arg0: i32, %arg1: i32) -> (i32, i32, i32) {
    %c0_i32 = arith.constant 0 : i32
    %c0_i32_0 = arith.constant 0 : i32
    %c0_i32_1 = arith.constant 0 : i32
    return %arg0, %c0_i32, %c0_i32_0 : i32, i32, i32
  }
  func.func @transform_3(%arg0: i32, %arg1: i32) -> (i32, i32, i32) {
    %c0_i32 = arith.constant 0 : i32
    %c0_i32_0 = arith.constant 0 : i32
    %c0_i32_1 = arith.constant 0 : i32
    return %arg0, %c0_i32, %c0_i32_0 : i32, i32, i32
  }
}

</mosaic_0001>

<llo_original>
// kernel: dice_loss.1
$region0: #{dice_loss.1}
  #allocation0 [shape = 'u32[]', space=smem, size = 0x4, offset = 0x4, fixed_abs, tag = 'smem constant byte address 0x4 - core index']
  #allocation1 [shape = 'u32[144,128]{1,0:T(1,128)}', space=vmem, size = 0x12000, scoped, tag = 'internal scratch']
  #allocation2 [shape = 'f32[4,2,128]{2,1,0:T(2,128)}', space=vmem, size = 0x1000, scoped, tag = 'scratch operand']
  #allocation3 [shape = 'f32[4,2,128]{2,1,0:T(2,128)}', space=vmem, size = 0x1000, scoped, tag = 'scratch operand']
  %s0 = inlined_call_operand.vmem [shape: f32[2,4,2,128], index: 0, kind: input, shape index: {}]
  %s1 = inlined_call_operand.vmem [shape: f32[2,4,2,128], index: 1, kind: input, shape index: {}]
  %s2 = inlined_call_operand.vmem [shape: f32[2,4,1], index: 2, kind: output, shape index: {0}]
  %s3 = inlined_call_operand.vmem [shape: f32[2,4,1], index: 3, kind: output, shape index: {1}]
  %4 = xla_tuple %s2, %s3
  %s5 = sld [smem:[#allocation0]]
  $region57: #{dice_loss.1} parent=0
    _
  %s7 = ssub.s32 1, %s5
  %s8 = scalar_select 0, %s7, %s5
  loop: start=0, step=1, limit=4
  $region2: #{dice_loss.1} parent=0 // loop_pre_header
    _
  $region3: #{dice_loss.1} parent=0 // loop_header
    %s10 = sphi 0, %s14
    %p11 = scmp.ge.s32.totalorder %s10, 4
    %s17 = sphi 0, %s29
    %s18 = sphi 0, %s25
    %s19 = sphi 0, %s17
    %s20 = sphi 0, %s18
    %s21 = sphi 0, %s19
    %s22 = sphi 0, %s20
    %s34 = sphi 0, %s36
    %s37 = sphi 0, %s34
    %s38 = sphi 0, %s37
    %s54 = sphi 0, %s38
    %s62 = sphi 0, %s64
    %s65 = sphi 0, %s62
    %s66 = sphi 0, %s65
    %s82 = sphi 0, %s66
    %s88 = sphi 0, %s90
    %s91 = sphi 0, %s88
    %s92 = sphi 0, %s91
    %s108 = sphi 0, %s92
    %s114 = sphi 0, %s116
    %s117 = sphi 0, %s114
    %s118 = sphi 0, %s117
    %s134 = sphi 0, %s118
  $region4: #{dice_loss.1} parent=0 // loop_header_branch
    %13 = sbr.rel (%p11) target = $region8
  $region5: #{dice_loss.1} parent=0 // loop_body
    %s15 = ssub.s32 %s10, 1
    %s16 = ssub.s32 %s10, 2
    %s23 = sadd.s32 1, %s18
    %p24 = scmp.ge.s32.totalorder %s23, 1
    %s25 = scalar_select %p24, 0, %s23
    %s26 = sadd.s32 1, %s17
    %s27 = scalar_select %p24, %s26, %s17
    %p28 = scmp.ge.s32.totalorder %s27, 2
    %s29 = scalar_select %p28, 0, %s27
    %s30 = ssub.s32 %s17, %s29
    %s31 = ssub.s32 %s18, %s25
    %s32 = sor.u32 %s30, %s31
    %p33 = scmp.eq.s32.totalorder %s32, 0
    %s35 = sadd.s32 %s34, 1
    %s36 = scalar_select %p33, %s34, %s35
    %p39 = pneg %p33
    %p40 = scmp.eq.s32.totalorder %s10, 1
    %p41 = por %p39, %p40
    %p42 = scmp.ne.s32.totalorder %s34, %s37
    %p43 = scmp.eq.s32.totalorder %s10, 0
    %p44 = por %p42, %p43
    %p45 = scmp.ne.s32.totalorder %s34, %s37
    %p46 = scmp.eq.s32.totalorder %s15, 1
    %p47 = por %p45, %p46
    %p48 = scmp.ne.s32.totalorder %s37, %s38
    %p49 = scmp.eq.s32.totalorder %s15, 0
    %p50 = por %p48, %p49
    %p51 = scmp.ne.s32.totalorder %s37, %s38
    %p52 = scmp.eq.s32.totalorder %s16, 1
    %p53 = por %p51, %p52
    %p55 = scmp.ne.s32.totalorder %s38, %s54
    %p56 = scmp.eq.s32.totalorder %s16, 0
    %p57 = por %p55, %p56
    %s58 = ssub.s32 %s17, %s29
    %s59 = ssub.s32 %s18, %s25
    %s60 = sor.u32 %s58, %s59
    %p61 = scmp.eq.s32.totalorder %s60, 0
    %s63 = sadd.s32 %s62, 1
    %s64 = scalar_select %p61, %s62, %s63
    %p67 = pneg %p61
    %p68 = scmp.eq.s32.totalorder %s10, 1
    %p69 = por %p67, %p68
    %p70 = scmp.ne.s32.totalorder %s62, %s65
    %p71 = scmp.eq.s32.totalorder %s10, 0
    %p72 = por %p70, %p71
    %p73 = scmp.ne.s32.totalorder %s62, %s65
    %p74 = scmp.eq.s32.totalorder %s15, 1
    %p75 = por %p73, %p74
    %p76 = scmp.ne.s32.totalorder %s65, %s66
    %p77 = scmp.eq.s32.totalorder %s15, 0
    %p78 = por %p76, %p77
    %p79 = scmp.ne.s32.totalorder %s65, %s66
    %p80 = scmp.eq.s32.totalorder %s16, 1
    %p81 = por %p79, %p80
    %p83 = scmp.ne.s32.totalorder %s66, %s82
    %p84 = scmp.eq.s32.totalorder %s16, 0
    %p85 = por %p83, %p84
    %s86 = ssub.s32 %s17, %s29
    %p87 = scmp.eq.s32.totalorder %s86, 0
    %s89 = sadd.s32 %s88, 1
    %s90 = scalar_select %p87, %s88, %s89
    %p93 = pneg %p87
    %p94 = scmp.eq.s32.totalorder %s10, 1
    %p95 = por %p93, %p94
    %p96 = scmp.ne.s32.totalorder %s88, %s91
    %p97 = scmp.eq.s32.totalorder %s10, 0
    %p98 = por %p96, %p97
    %p99 = scmp.ne.s32.totalorder %s88, %s91
    %p100 = scmp.eq.s32.totalorder %s15, 1
    %p101 = por %p99, %p100
    %p102 = scmp.ne.s32.totalorder %s91, %s92
    %p103 = scmp.eq.s32.totalorder %s15, 0
    %p104 = por %p102, %p103
    %p105 = scmp.ne.s32.totalorder %s91, %s92
    %p106 = scmp.eq.s32.totalorder %s16, 1
    %p107 = por %p105, %p106
    %p109 = scmp.ne.s32.totalorder %s92, %s108
    %p110 = scmp.eq.s32.totalorder %s16, 0
    %p111 = por %p109, %p110
    %s112 = ssub.s32 %s17, %s29
    %p113 = scmp.eq.s32.totalorder %s112, 0
    %s115 = sadd.s32 %s114, 1
    %s116 = scalar_select %p113, %s114, %s115
    %p119 = pneg %p113
    %p120 = scmp.eq.s32.totalorder %s10, 1
    %p121 = por %p119, %p120
    %p122 = scmp.ne.s32.totalorder %s114, %s117
    %p123 = scmp.eq.s32.totalorder %s10, 0
    %p124 = por %p122, %p123
    %p125 = scmp.ne.s32.totalorder %s114, %s117
    %p126 = scmp.eq.s32.totalorder %s15, 1
    %p127 = por %p125, %p126
    %p128 = scmp.ne.s32.totalorder %s117, %s118
    %p129 = scmp.eq.s32.totalorder %s15, 0
    %p130 = por %p128, %p129
    %p131 = scmp.ne.s32.totalorder %s117, %s118
    %p132 = scmp.eq.s32.totalorder %s16, 1
    %p133 = por %p131, %p132
    %p135 = scmp.ne.s32.totalorder %s118, %s134
    %p136 = scmp.eq.s32.totalorder %s16, 0
    %p137 = por %p135, %p136
    %p138 = scmp.le.s32.totalorder 1, %s10
    %p139 = scmp.lt.s32.totalorder %s10, 3
    %p140 = pnand %p138, %p139
    %p141 = pneg %p140
    // Predicated region
    $region9: #{dice_loss.1} parent=5 // pred_check
      _
    $region10: #{dice_loss.1} parent=5 // pred_check_branch
      %143 = sbr.rel (%p140) target = $region12
    $region11: #{dice_loss.1} parent=5 // pred_region
      %s144 = ssub.s32 %s10, 1
    $region12: #{dice_loss.1} parent=5 // pred_fallthru
      _
    %p145 = scmp.lt.s32.totalorder %s10, 2
    // Predicated region
    $region13: #{dice_loss.1} parent=5 // pred_check
      %p146 = pneg %p145
    $region14: #{dice_loss.1} parent=5 // pred_check_branch
      %148 = sbr.rel (%p146) target = $region16
    $region15: #{dice_loss.1} parent=5 // pred_region
      // Predicated region
      $region17: #{dice_loss.1} parent=15 // pred_check
        %p149 = pneg %p44
      $region18: #{dice_loss.1} parent=15 // pred_check_branch
        %151 = sbr.rel (%p149) target = $region20
      $region19: #{dice_loss.1} parent=15 // pred_region
        %p152 = scmp.lt.s32.totalorder %s17, 1
        %s153 = scalar_select %p152, %s17, 1
        %p154 = scmp.lt.s32.totalorder %s18, 0
        %s155 = scalar_select %p154, %s18, 0
        %s156 = smul.addr %s153, 4
        %s157 = sadd.s32 %s155, %s156
        %s158 = smul.addr %s157, 2
        %s159 = scalar_lea.vmem %s0, %s158
      $region20: #{dice_loss.1} parent=15 // pred_fallthru
        _
      // Predicated region
      $region21: #{dice_loss.1} parent=15 // pred_check
        %p160 = pneg %p72
      $region22: #{dice_loss.1} parent=15 // pred_check_branch
        %162 = sbr.rel (%p160) target = $region24
      $region23: #{dice_loss.1} parent=15 // pred_region
        %p163 = scmp.lt.s32.totalorder %s17, 1
        %s164 = scalar_select %p163, %s17, 1
        %p165 = scmp.lt.s32.totalorder %s18, 0
        %s166 = scalar_select %p165, %s18, 0
        %s167 = smul.addr %s164, 4
        %s168 = sadd.s32 %s166, %s167
        %s169 = smul.addr %s168, 2
        %s170 = scalar_lea.vmem %s1, %s169
      $region24: #{dice_loss.1} parent=15 // pred_fallthru
        _
    $region16: #{dice_loss.1} parent=5 // pred_fallthru
      _
    %p171 = scmp.le.s32.totalorder 1, %s10
    %p172 = scmp.lt.s32.totalorder %s10, 3
    %p173 = pnand %p171, %p172
    %p174 = pneg %p173
    // Predicated region
    $region25: #{dice_loss.1} parent=5 // pred_check
      _
    $region26: #{dice_loss.1} parent=5 // pred_check_branch
      %176 = sbr.rel (%p173) target = $region28
    $region27: #{dice_loss.1} parent=5 // pred_region
      %s177 = ssub.s32 %s10, 1
      %p178 = scmp.lt.s32.totalorder %s19, 1
      %s179 = scalar_select %p178, %s19, 1
      %p180 = scmp.lt.s32.totalorder %s20, 0
      %s181 = scalar_select %p180, %s20, 0
      %s182 = smul.addr %s179, 4
      %s183 = sadd.s32 %s181, %s182
      %s184 = smul.addr %s183, 2
      %s185 = scalar_lea.vmem %s0, %s184
      %p186 = pneg %p50
      %p187 = pneg %p47
      %p188 = scmp.lt.s32.totalorder %s19, 1
      %s189 = scalar_select %p188, %s19, 1
      %p190 = scmp.lt.s32.totalorder %s20, 0
      %s191 = scalar_select %p190, %s20, 0
      %s192 = smul.addr %s189, 4
      %s193 = sadd.s32 %s191, %s192
      %s194 = smul.addr %s193, 2
      %s195 = scalar_lea.vmem %s1, %s194
      %p196 = pneg %p78
      %p197 = pneg %p75
      %p198 = pneg %p104
      %p199 = pneg %p101
      %p200 = scmp.lt.s32.totalorder %s19, 1
      %s201 = scalar_select %p200, %s19, 1
      %s202 = smul.addr %s201, 4
      %s203 = scalar_lea.vmem %s2, %s202
      %p204 = pneg %p130
      %p205 = pneg %p127
      %p206 = scmp.lt.s32.totalorder %s19, 1
      %s207 = scalar_select %p206, %s19, 1
      %s208 = smul.addr %s207, 4
      %s209 = scalar_lea.vmem %s3, %s208
      %p210 = scmp.lt.s32.totalorder %s19, 1
      %s211 = scalar_select %p210, %s19, 1
      %p212 = scmp.lt.s32.totalorder %s20, 0
      %s213 = scalar_select %p212, %s20, 0
      %s214 = smul.addr %s211, 4
      %s215 = sadd.s32 %s213, %s214
      %s216 = smul.addr %s215, 2
      %s217 = scalar_lea.vmem %s0, %s216
      %p218 = scmp.lt.s32.totalorder %s19, 1
      %s219 = scalar_select %p218, %s19, 1
      %p220 = scmp.lt.s32.totalorder %s20, 0
      %s221 = scalar_select %p220, %s20, 0
      %s222 = smul.addr %s219, 4
      %s223 = sadd.s32 %s221, %s222
      %s224 = smul.addr %s223, 2
      %s225 = scalar_lea.vmem %s1, %s224
      %p226 = scmp.lt.s32.totalorder %s19, 1
      %s227 = scalar_select %p226, %s19, 1
      %s228 = smul.addr %s227, 4
      %s229 = scalar_lea.vmem %s2, %s228
      %p230 = scmp.lt.s32.totalorder %s19, 1
      %s231 = scalar_select %p230, %s19, 1
      %s232 = smul.addr %s231, 4
      %s233 = scalar_lea.vmem %s3, %s232
      %p234 = scmp.eq.s32.totalorder %s20, 0
      // Predicated region
      $region29: #{dice_loss.1} parent=27 // pred_check
        %p235 = pneg %p234
      $region30: #{dice_loss.1} parent=27 // pred_check_branch
        %237 = sbr.rel (%p235) target = $region32
      $region31: #{dice_loss.1} parent=27 // pred_region
        %238 = vst [vmem:[#allocation2] sm:$0x3] 0.0
        %239 = vst [vmem:[#allocation2 + $0x2] sm:$0x3] 0.0
        %240 = vst [vmem:[#allocation2 + $0x4] sm:$0x3] 0.0
        %241 = vst [vmem:[#allocation2 + $0x6] sm:$0x3] 0.0
        %242 = vst [vmem:[#allocation3] sm:$0x3] 0.0
        %243 = vst [vmem:[#allocation3 + $0x2] sm:$0x3] 0.0
        %244 = vst [vmem:[#allocation3 + $0x4] sm:$0x3] 0.0
        %245 = vst [vmem:[#allocation3 + $0x6] sm:$0x3] 0.0
      $region32: #{dice_loss.1} parent=27 // pred_fallthru
        _
      %v246 = vld [vmem:[%s217] sm:$0x3]
      %v247 = vld [vmem:[%s217 + $0x2] sm:$0x3]
      %v248 = vld [vmem:[%s217 + $0x4] sm:$0x3]
      %v249 = vld [vmem:[%s217 + $0x6] sm:$0x3]
      %v250 = vld [vmem:[%s225] sm:$0x3]
      %v251 = vld [vmem:[%s225 + $0x2] sm:$0x3]
      %v252 = vld [vmem:[%s225 + $0x4] sm:$0x3]
      %v253 = vld [vmem:[%s225 + $0x6] sm:$0x3]
      %v254 = vxor.u32 %v246, 2147483648
      %v255 = vxor.u32 %v247, 2147483648
      %v256 = vxor.u32 %v248, 2147483648
      %v257 = vxor.u32 %v249, 2147483648
      %v258 = vmul.f32 %v254, 1.442695
      %v259 = vpow.pop %v258
      %v260 = vmul.f32 %v255, 1.442695
      %v261 = vpow.pop %v260
      %v262 = vmul.f32 %v256, 1.442695
      %v263 = vpow.pop %v262
      %v264 = vmul.f32 %v257, 1.442695
      %v265 = vpow.pop %v264
      %v266 = vadd.f32 %v259, 1.0
      %v267 = vadd.f32 %v261, 1.0
      %v268 = vadd.f32 %v263, 1.0
      %v269 = vadd.f32 %v265, 1.0
      %v270 = vrcp.pop %v266
      %v271 = vmul.f32 1.0, %v270
      %v272 = vrcp.pop %v267
      %v273 = vmul.f32 1.0, %v272
      %v274 = vrcp.pop %v268
      %v275 = vmul.f32 1.0, %v274
      %v276 = vrcp.pop %v269
      %v277 = vmul.f32 1.0, %v276
      %v278 = vld [vmem:[#allocation2] sm:$0x3]
      %v279 = vld [vmem:[#allocation2 + $0x2] sm:$0x3]
      %v280 = vld [vmem:[#allocation2 + $0x4] sm:$0x3]
      %v281 = vld [vmem:[#allocation2 + $0x6] sm:$0x3]
      %v282 = vmul.f32 %v271, %v250
      %v283 = vmul.f32 %v273, %v251
      %v284 = vmul.f32 %v275, %v252
      %v285 = vmul.f32 %v277, %v253
      %v286 = vadd.f32 %v278, %v282
      %v287 = vadd.f32 %v279, %v283
      %v288 = vadd.f32 %v280, %v284
      %v289 = vadd.f32 %v281, %v285
      %290 = vst [vmem:[#allocation2] sm:$0x3] %v286
      %291 = vst [vmem:[#allocation2 + $0x2] sm:$0x3] %v287
      %292 = vst [vmem:[#allocation2 + $0x4] sm:$0x3] %v288
      %293 = vst [vmem:[#allocation2 + $0x6] sm:$0x3] %v289
      %v294 = vld [vmem:[#allocation3] sm:$0x3]
      %v295 = vld [vmem:[#allocation3 + $0x2] sm:$0x3]
      %v296 = vld [vmem:[#allocation3 + $0x4] sm:$0x3]
      %v297 = vld [vmem:[#allocation3 + $0x6] sm:$0x3]
      %v298 = vmul.f32 %v271, %v271
      %v299 = vmul.f32 %v273, %v273
      %v300 = vmul.f32 %v275, %v275
      %v301 = vmul.f32 %v277, %v277
      %v302 = vmul.f32 %v250, %v250
      %v303 = vmul.f32 %v251, %v251
      %v304 = vmul.f32 %v252, %v252
      %v305 = vmul.f32 %v253, %v253
      %v306 = vadd.f32 %v298, %v302
      %v307 = vadd.f32 %v299, %v303
      %v308 = vadd.f32 %v300, %v304
      %v309 = vadd.f32 %v301, %v305
      %v310 = vadd.f32 %v294, %v306
      %v311 = vadd.f32 %v295, %v307
      %v312 = vadd.f32 %v296, %v308
      %v313 = vadd.f32 %v297, %v309
      %314 = vst [vmem:[#allocation3] sm:$0x3] %v310
      %315 = vst [vmem:[#allocation3 + $0x2] sm:$0x3] %v311
      %316 = vst [vmem:[#allocation3 + $0x4] sm:$0x3] %v312
      %317 = vst [vmem:[#allocation3 + $0x6] sm:$0x3] %v313
      // Predicated region
      $region33: #{dice_loss.1} parent=27 // pred_check
        %p318 = pneg %p234
      $region34: #{dice_loss.1} parent=27 // pred_check_branch
        %320 = sbr.rel (%p318) target = $region36
      $region35: #{dice_loss.1} parent=27 // pred_region
        %v321 = vld [vmem:[#allocation2] sm:$0x3]
        %v322 = vld [vmem:[#allocation2 + $0x2] sm:$0x3]
        %v323 = vld [vmem:[#allocation2 + $0x4] sm:$0x3]
        %v324 = vld [vmem:[#allocation2 + $0x6] sm:$0x3]
        %v325 = vld [vmem:[#allocation3] sm:$0x3]
        %v326 = vld [vmem:[#allocation3 + $0x2] sm:$0x3]
        %v327 = vld [vmem:[#allocation3 + $0x4] sm:$0x3]
        %v328 = vld [vmem:[#allocation3 + $0x6] sm:$0x3]
        %vm329 = vcmask 1041408
        %v330 = vsel %vm329, %v321, 0.0
        %331 = vadd.xlane.f32.xlu0 %v330
        %v332 = vpop.xlane.xlu0 %331
        %v333 = vsel %vm329, %v322, 0.0
        %334 = vadd.xlane.f32.xlu0 %v333
        %v335 = vpop.xlane.xlu0 %334
        %v336 = vsel %vm329, %v323, 0.0
        %337 = vadd.xlane.f32.xlu0 %v336
        %v338 = vpop.xlane.xlu0 %337
        %v339 = vsel %vm329, %v324, 0.0
        %340 = vadd.xlane.f32.xlu0 %v339
        %v341 = vpop.xlane.xlu0 %340
        %v342 = vsel %vm329, %v325, 0.0
        %343 = vadd.xlane.f32.xlu0 %v342
        %v344 = vpop.xlane.xlu0 %343
        %v345 = vsel %vm329, %v326, 0.0
        %346 = vadd.xlane.f32.xlu0 %v345
        %v347 = vpop.xlane.xlu0 %346
        %v348 = vsel %vm329, %v327, 0.0
        %349 = vadd.xlane.f32.xlu0 %v348
        %v350 = vpop.xlane.xlu0 %349
        %v351 = vsel %vm329, %v328, 0.0
        %352 = vadd.xlane.f32.xlu0 %v351
        %v353 = vpop.xlane.xlu0 %352
        %v358 = vlaneseq
        %v359 = vand.u32 %v358, 127
        %v360 = vlaneseq
        %v361 = vshrl.u32 %v360, 7
        %v362 = vsub.s32 %v359, %v361
        %v363 = vrot.slane %v332, %v362
        %v364 = vlaneseq
        %v365 = vshrl.u32 %v364, 7
        %v366 = vsub.s32 %v359, %v365
        %v367 = vrot.slane %v335, %v366
        %v368 = vlaneseq
        %v369 = vshrl.u32 %v368, 7
        %v370 = vsub.s32 %v359, %v369
        %v371 = vrot.slane %v338, %v370
        %v372 = vlaneseq
        %v373 = vshrl.u32 %v372, 7
        %v374 = vsub.s32 %v359, %v373
        %v375 = vrot.slane %v341, %v374
        %vm376 = vcmask 1041409
        %v377 = vsel %vm376, %v367, %v363
        %vm378 = vcmask 1042434
        %v379 = vsel %vm378, %v371, %v377
        %vm380 = vcmask 1043459
        %v381 = vsel %vm380, %v375, %v379
        %vm383 = vcmask 11264
        %v384 = vsel %vm383, %v381, 0.0
        %385 = vadd.xlane.f32.xlu0 %v384
        %v386 = vpop.xlane.xlu0 %385
        %vm387 = vcmask 3072
        %388 = vst.msk [vmem:[%s229] sm:$0xf] %vm387, %v386
        %v393 = vlaneseq
        %v394 = vshrl.u32 %v393, 7
        %v395 = vsub.s32 %v359, %v394
        %v396 = vrot.slane %v344, %v395
        %v397 = vlaneseq
        %v398 = vshrl.u32 %v397, 7
        %v399 = vsub.s32 %v359, %v398
        %v400 = vrot.slane %v347, %v399
        %v401 = vlaneseq
        %v402 = vshrl.u32 %v401, 7
        %v403 = vsub.s32 %v359, %v402
        %v404 = vrot.slane %v350, %v403
        %v405 = vlaneseq
        %v406 = vshrl.u32 %v405, 7
        %v407 = vsub.s32 %v359, %v406
        %v408 = vrot.slane %v353, %v407
        %v409 = vsel %vm376, %v400, %v396
        %v410 = vsel %vm378, %v404, %v409
        %v411 = vsel %vm380, %v408, %v410
        %v413 = vsel %vm383, %v411, 0.0
        %414 = vadd.xlane.f32.xlu0 %v413
        %v415 = vpop.xlane.xlu0 %414
        %416 = vst.msk [vmem:[%s233] sm:$0xf] %vm387, %v415
      $region36: #{dice_loss.1} parent=27 // pred_fallthru
        _
      %p417 = scmp.lt.s32.totalorder %s19, 1
      %s418 = scalar_select %p417, %s19, 1
      %s419 = smul.addr %s418, 4
      %s420 = scalar_lea.vmem %s2, %s419
      %p421 = scmp.lt.s32.totalorder %s19, 1
      %s422 = scalar_select %p421, %s19, 1
      %s423 = smul.addr %s422, 4
      %s424 = scalar_lea.vmem %s3, %s423
      // Predicated region
      $region37: #{dice_loss.1} parent=27 // pred_check
        %p425 = pneg %p101
      $region38: #{dice_loss.1} parent=27 // pred_check_branch
        %427 = sbr.rel (%p425) target = $region40
      $region39: #{dice_loss.1} parent=27 // pred_region
        _
      $region40: #{dice_loss.1} parent=27 // pred_fallthru
        _
      // Predicated region
      $region41: #{dice_loss.1} parent=27 // pred_check
        %p428 = pneg %p127
      $region42: #{dice_loss.1} parent=27 // pred_check_branch
        %430 = sbr.rel (%p428) target = $region44
      $region43: #{dice_loss.1} parent=27 // pred_region
        _
      $region44: #{dice_loss.1} parent=27 // pred_fallthru
        _
    $region28: #{dice_loss.1} parent=5 // pred_fallthru
      _
    %p431 = scmp.le.s32.totalorder 2, %s10
    // Predicated region
    $region45: #{dice_loss.1} parent=5 // pred_check
      %p432 = pneg %p431
    $region46: #{dice_loss.1} parent=5 // pred_check_branch
      %434 = sbr.rel (%p432) target = $region48
    $region47: #{dice_loss.1} parent=5 // pred_region
      %s435 = ssub.s32 %s10, 2
      // Predicated region
      $region49: #{dice_loss.1} parent=47 // pred_check
        %p436 = pneg %p107
      $region50: #{dice_loss.1} parent=47 // pred_check_branch
        %438 = sbr.rel (%p436) target = $region52
      $region51: #{dice_loss.1} parent=47 // pred_region
        %p439 = scmp.lt.s32.totalorder %s21, 1
        %s440 = scalar_select %p439, %s21, 1
        %s441 = smul.addr %s440, 4
        %s442 = scalar_lea.vmem %s2, %s441
      $region52: #{dice_loss.1} parent=47 // pred_fallthru
        _
      // Predicated region
      $region53: #{dice_loss.1} parent=47 // pred_check
        %p443 = pneg %p133
      $region54: #{dice_loss.1} parent=47 // pred_check_branch
        %445 = sbr.rel (%p443) target = $region56
      $region55: #{dice_loss.1} parent=47 // pred_region
        %p446 = scmp.lt.s32.totalorder %s21, 1
        %s447 = scalar_select %p446, %s21, 1
        %s448 = smul.addr %s447, 4
        %s449 = scalar_lea.vmem %s3, %s448
      $region56: #{dice_loss.1} parent=47 // pred_fallthru
        _
    $region48: #{dice_loss.1} parent=5 // pred_fallthru
      _
  $region6: #{dice_loss.1} parent=0 // loop_footer
    %s14 = sadd.s32 1, %s10
  $region7: #{dice_loss.1} parent=0 // loop_footer_branch
    %9 = sbr.rel target = $region3
  $region8: #{dice_loss.1} parent=0 // loop_exit
    _

</llo_original>
